<compile_context>
chip_gen: v5e
topology: v5e:2x2
jax: 0.10.0
libtpu: 0.0.40
codegen_flags: <defaults>
</compile_context>

<pallas_src>
import functools

import jax
import jax.numpy as jnp
from jax import lax
from jax.experimental import pallas as pl
from jax.experimental.pallas import tpu as pltpu

BN_EPS = 1e-5


def _round_up(x, m):
    return ((x + m - 1) // m) * m


def _vmem_budget_bytes():
    """Generation-aware scoped-VMEM budget (~3/4 of per-core VMEM)."""
    cap = 64 << 20  # conservative default (v7x per-TensorCore VMEM)
    try:
        info = pltpu.get_tpu_info()
        c = getattr(info, "vmem_capacity_bytes", None)
        if c:
            cap = int(c)
    except Exception:
        pass
    cap = min(max(cap, 16 << 20), 128 << 20)
    return (cap * 3) // 4


# --------------------------------------------------------------------------- #
# Kernels
# --------------------------------------------------------------------------- #
def _fused_kernel(x_ref, w_ref, b_ref, g_ref, bt_ref, o_ref):
    """Whole problem VMEM-resident: linear + exact two-pass BN + relu."""
    # x: (N, in_wp), w: (in_wp, wp) pre-transposed -> contract (1, 0): no XLU
    # transpose, canonical MXU feed.
    y = lax.dot_general(x_ref[...], w_ref[...], (((1,), (0,)), ((), ())),
                        preferred_element_type=jnp.float32)
    y = y + b_ref[...]                                       # (N, wp) f32
    inv_n = jnp.float32(1.0 / y.shape[0])
    mean = jnp.sum(y, axis=0, keepdims=True) * inv_n
    yc = y - mean
    var = jnp.sum(yc * yc, axis=0, keepdims=True) * inv_n    # biased variance
    scale = lax.rsqrt(var + BN_EPS) * g_ref[...]
    o_ref[...] = jnp.maximum(yc * scale + bt_ref[...], 0.0).astype(o_ref.dtype)


def _linear_stats_kernel(x_ref, w_ref, b_ref, y_ref, mean_ref, rstd_ref,
                         sum_ref, sq_ref, *, n_total):
    """Pass 1: per-(feature, batch) tile linear+bias; accumulate bias-shifted
    sum / sum-of-squares over the batch axis; emit mean/rstd at the last step.
    Grid = (feature tiles: "parallel", batch tiles: "arbitrary")."""
    j = pl.program_id(1)

    @pl.when(j == 0)
    def _():
        sum_ref[...] = jnp.zeros_like(sum_ref)
        sq_ref[...] = jnp.zeros_like(sq_ref)

    b = b_ref[...]                                           # (1, tile_f) f32
    y = lax.dot_general(x_ref[...], w_ref[...], (((1,), (0,)), ((), ())),
                        preferred_element_type=jnp.float32) + b
    y_ref[...] = y.astype(y_ref.dtype)                       # pre-BN activations

    # Mask zero-padded batch rows out of the statistics (divisor = true N).
    rows = y.shape[0]
    row_ids = j * rows + lax.broadcasted_iota(jnp.int32, (rows, 1), 0)
    yc = jnp.where(row_ids < n_total, y - b, 0.0)            # bias-shifted stats
    sum_ref[...] += jnp.sum(yc, axis=0, keepdims=True)
    sq_ref[...] += jnp.sum(yc * yc, axis=0, keepdims=True)

    @pl.when(j == pl.num_programs(1) - 1)
    def _():
        inv_n = jnp.float32(1.0 / n_total)
        mean_c = sum_ref[...] * inv_n
        var = jnp.maximum(sq_ref[...] * inv_n - mean_c * mean_c, 0.0)
        mean_ref[...] = mean_c + b
        rstd_ref[...] = lax.rsqrt(var + BN_EPS)


def _bn_relu_kernel(y_ref, mean_ref, rstd_ref, g_ref, bt_ref, o_ref):
    """Pass 2: normalize + affine + relu (batch-parallel, lane-dense tiles)."""
    y = y_ref[...].astype(jnp.float32)
    scale = rstd_ref[...] * g_ref[...]
    o_ref[...] = jnp.maximum((y - mean_ref[...]) * scale + bt_ref[...],
                             0.0).astype(o_ref.dtype)


# --------------------------------------------------------------------------- #
# Parameter preparation (hoisted out of the hot path) and wrapper
# --------------------------------------------------------------------------- #
def prepare_params(weight, bias, gamma, beta, *, use_bf16_matmul=False):
    """Pad both weight dims to multiples of 128, pre-transpose to the MXU
    (K, N) layout, pad the per-feature vectors, and optionally cast the weight
    to bf16.  Call ONCE and reuse across forward calls.

    weight: (out_w, in_w) PyTorch nn.Linear weight; y = x @ weight.T + bias.
    """
    out_w, in_w = weight.shape
    wp = _round_up(out_w, 128)
    in_wp = _round_up(in_w, 128)
    w_pad = jnp.pad(weight.astype(jnp.float32),
                    ((0, wp - out_w), (0, in_wp - in_w)))
    w_t = jnp.transpose(w_pad)                                # (in_wp, wp)
    if use_bf16_matmul:
        w_t = w_t.astype(jnp.bfloat16)
    pad = wp - out_w
    b_p = jnp.pad(bias.astype(jnp.float32), (0, pad)).reshape(1, wp)
    g_p = jnp.pad(gamma.astype(jnp.float32), (0, pad)).reshape(1, wp)
    bt_p = jnp.pad(beta.astype(jnp.float32), (0, pad)).reshape(1, wp)
    return dict(w_t=w_t, b_p=b_p, g_p=g_p, bt_p=bt_p,
                out_w=out_w, in_w=in_w, wp=wp, in_wp=in_wp,
                use_bf16=use_bf16_matmul)


def fully_connected_block_nonlinear_prepared(x, params, *, tile_n=None,
                                             tile_f=None, y_dtype=None,
                                             force_tiled=False):
    """relu(batchnorm1d(linear(x))), training-mode batch statistics."""
    n, in_w = x.shape
    assert in_w == params["in_w"], "input feature dim mismatch"
    in_wp, wp, out_w = params["in_wp"], params["wp"], params["out_w"]
    use_bf16 = params["use_bf16"]
    budget = _vmem_budget_bytes()

    # K padding (zero columns) is numerically exact and makes x loads lane-dense.
    if in_wp != in_w:
        x = jnp.pad(x, ((0, 0), (0, in_wp - in_w)))
    if use_bf16:
        x = x.astype(jnp.bfloat16)        # cast BEFORE pallas_call: halves DMA

    xbytes = wbytes = 2 if use_bf16 else 4
    if y_dtype is None:
        y_dtype = jnp.bfloat16 if use_bf16 else jnp.float32
    ybytes = jnp.dtype(y_dtype).itemsize

    w_t, b_p, g_p, bt_p = (params["w_t"], params["b_p"],
                           params["g_p"], params["bt_p"])

    # --------------------------------------------------------------------- #
    # Fused single-block path: no y round trip through HBM, exact mean/var.
    # --------------------------------------------------------------------- #
    fused_bytes = (n * in_wp * xbytes + in_wp * wp * wbytes
                   + 3 * n * wp * 4 + 8 * wp * 4)
    if (not force_tiled) and tile_n is None and fused_bytes <= budget:
        def full(shape):
            return pl.BlockSpec(shape, lambda: (0,) * len(shape),
                                memory_space=pltpu.VMEM)
        out_p = pl.pallas_call(
            _fused_kernel,
            out_shape=jax.ShapeDtypeStruct((n, wp), jnp.float32),
            grid=(),
            in_specs=[full((n, in_wp)), full((in_wp, wp)), full((1, wp)),
                      full((1, wp)), full((1, wp))],
            out_specs=full((n, wp)),
            compiler_params=pltpu.CompilerParams(vmem_limit_bytes=budget),
        )(x, w_t, b_p, g_p, bt_p)
        return out_p[:, :out_w] if wp != out_w else out_p

    # --------------------------------------------------------------------- #
    # Tiled two-pass path.
    # --------------------------------------------------------------------- #
    # Feature tile: largest 128-multiple divisor of wp whose weight block
    # stays within ~1/3 of the VMEM budget (bounds weight VMEM vs. width).
    if tile_f is None:
        tile_f = wp
        for d in range(wp, 0, -128):
            if wp % d == 0 and in_wp * d * wbytes <= max(budget // 3,
                                                         in_wp * 128 * wbytes):
                tile_f = d
                break
    assert wp % tile_f == 0 and tile_f % 128 == 0
    num_f = wp // tile_f
    wbuf = 1 if num_f == 1 else 2

    # Batch tile: prefer large 128/256-aligned tiles; ragged N is handled by
    # zero-row padding + in-kernel masking, so no divisibility requirement.
    if tile_n is None:
        tile_n = 8
        for cand in (1024, 512, 256, 128, 64, 32, 16, 8):
            per_step = (cand * in_wp * xbytes * 2          # x (double buffered)
                        + in_wp * tile_f * wbytes * wbuf   # weight block(s)
                        + cand * tile_f * ybytes * 2       # y out (double buffered)
                        + 3 * cand * tile_f * 4            # in-kernel f32 temps
                        + 8 * wp * 4)                      # stats blocks/scratch
            if per_step <= budget:
                tile_n = cand
                break
    tile_n = max(8, min(int(tile_n), _round_up(n, 8)))
    assert tile_n % 8 == 0

    n_pad = _round_up(n, tile_n)
    if n_pad != n:
        # Zero-row padding: padded rows give y == bias; they are masked out of
        # the batch statistics in-kernel (divisor stays the true N).
        x = jnp.pad(x, ((0, n_pad - n), (0, 0)))
    num_n = n_pad // tile_n

    w_index = lambda f, j: (0, f)
    if num_f == 1:
        try:
            # Grid-invariant weight block: single-buffer it (halves its VMEM).
            w_spec = pl.BlockSpec((in_wp, tile_f), w_index,
                                  pipeline_mode=pl.Buffered(1))
        except TypeError:
            w_spec = pl.BlockSpec((in_wp, tile_f), w_index)
    else:
        w_spec = pl.BlockSpec((in_wp, tile_f), w_index)

    # Pass 1: matmul + bias + f32 sum/sumsq stats; mean/rstd at the last step.
    y_p, mean, rstd = pl.pallas_call(
        functools.partial(_linear_stats_kernel, n_total=n),
        out_shape=(jax.ShapeDtypeStruct((n_pad, wp), y_dtype),
                   jax.ShapeDtypeStruct((1, wp), jnp.float32),
                   jax.ShapeDtypeStruct((1, wp), jnp.float32)),
        grid=(num_f, num_n),
        in_specs=[
            pl.BlockSpec((tile_n, in_wp), lambda f, j: (j, 0)),
            w_spec,
            pl.BlockSpec((1, tile_f), lambda f, j: (0, f)),
        ],
        out_specs=(
            pl.BlockSpec((tile_n, tile_f), lambda f, j: (j, f)),
            pl.BlockSpec((1, tile_f), lambda f, j: (0, f)),
            pl.BlockSpec((1, tile_f), lambda f, j: (0, f)),
        ),
        scratch_shapes=[pltpu.VMEM((1, tile_f), jnp.float32),
                        pltpu.VMEM((1, tile_f), jnp.float32)],
        compiler_params=pltpu.CompilerParams(
            dimension_semantics=("parallel", "arbitrary"),
            vmem_limit_bytes=budget),
    )(x, w_t, b_p)

    # Pass 2 tile: decoupled from pass 1; large lane-dense row tiles.
    tile_n2 = 8
    for cand in (n_pad, 2048, 1024, 512, 256, 128, 64, 32, 16, 8):
        if cand <= n_pad and n_pad % cand == 0:
            est = cand * wp * (2 * ybytes + 3 * 4) + 8 * wp * 4
            if est <= budget:
                tile_n2 = cand
                break

    # Note: input_output_aliases={0: 0} could reuse the y buffer for the
    # output when y_dtype == float32; omitted because the bf16-y path
    # dtype-mismatches and the capacity win is marginal here.
    out_p = pl.pallas_call(
        _bn_relu_kernel,
        out_shape=jax.ShapeDtypeStruct((n_pad, wp), jnp.float32),
        grid=(n_pad // tile_n2,),
        in_specs=[
            pl.BlockSpec((tile_n2, wp), lambda i: (i, 0)),
            pl.BlockSpec((1, wp), lambda i: (0, 0)),
            pl.BlockSpec((1, wp), lambda i: (0, 0)),
            pl.BlockSpec((1, wp), lambda i: (0, 0)),
            pl.BlockSpec((1, wp), lambda i: (0, 0)),
        ],
        out_specs=pl.BlockSpec((tile_n2, wp), lambda i: (i, 0)),
        compiler_params=pltpu.CompilerParams(
            dimension_semantics=("parallel",),
            vmem_limit_bytes=budget),
    )(y_p, mean, rstd, g_p, bt_p)

    out = out_p[:n] if n_pad != n else out_p
    return out[:, :out_w] if wp != out_w else out


def fully_connected_block_nonlinear(x, weight, bias, gamma, beta, *,
                                    use_bf16_matmul=False, **kwargs):
    """One-shot convenience wrapper (pads params per call; for repeated use
    call prepare_params once and fully_connected_block_nonlinear_prepared)."""
    params = prepare_params(weight, bias, gamma, beta,
                            use_bf16_matmul=use_bf16_matmul)
    return fully_connected_block_nonlinear_prepared(x, params, **kwargs)


# --------------------------------------------------------------------------- #
# Pure-JAX reference (PyTorch training-mode forward semantics)
# --------------------------------------------------------------------------- #
def _reference(x, weight, bias, gamma, beta):
    y = x @ weight.T + bias
    mean = y.mean(axis=0, keepdims=True)
    var = ((y - mean) ** 2).mean(axis=0, keepdims=True)     # biased variance
    return jnp.maximum((y - mean) / jnp.sqrt(var + BN_EPS) * gamma + beta, 0.0)


if __name__ == "__main__":
    key = jax.random.PRNGKey(0)
    width = 32
    k_x, k_x2, k_w, k_b = jax.random.split(key, 4)

    # Deterministic synthetic parameters (not a checkpoint load).
    bound = 1.0 / float(width) ** 0.5
    weight = jax.random.uniform(k_w, (width, width), jnp.float32, -bound, bound)
    bias = jax.random.uniform(k_b, (width,), jnp.float32, -bound, bound)
    gamma = jnp.ones((width,), jnp.float32)     # BatchNorm1d default weight
    beta = jnp.zeros((width,), jnp.float32)     # BatchNorm1d default bias

    # 1) Small batch -> fused single-block kernel (f32 MXU).
    x_small = jax.random.normal(k_x, (8, width), jnp.float32)
    out = jax.block_until_ready(
        fully_connected_block_nonlinear(x_small, weight, bias, gamma, beta))
    ref = _reference(x_small, weight, bias, gamma, beta)
    assert out.shape == (8, width)
    assert jnp.allclose(out, ref, atol=1e-4, rtol=1e-4)

    # 2) Ragged batch (70 rows) -> forced tiled two-pass path (f32), exercising
    #    batch padding + in-kernel masked statistics.
    params = prepare_params(weight, bias, gamma, beta)
    x_big = jax.random.normal(k_x2, (70, width), jnp.float32)
    out_t = jax.block_until_ready(
        fully_connected_block_nonlinear_prepared(x_big, params,
                                                 tile_n=16, force_tiled=True))
    ref_t = _reference(x_big, weight, bias, gamma, beta)
    assert out_t.shape == (70, width)
    assert jnp.allclose(out_t, ref_t, atol=1e-4, rtol=1e-4)

    # 3) bf16 MXU operands (cast in wrapper) + bf16 y intermediate; f32 stats
    #    and BN/ReLU epilogue; loose tolerance.
    params_bf = prepare_params(weight, bias, gamma, beta, use_bf16_matmul=True)
    out_bf = jax.block_until_ready(
        fully_connected_block_nonlinear_prepared(x_big, params_bf,
                                                 tile_n=16, force_tiled=True))
    assert jnp.allclose(out_bf, ref_t, atol=1e-1, rtol=1e-1)

    # TODO(synk): PyTorch training-mode BatchNorm1d also updates
    # running_mean/running_var as a side effect; the forward output does not
    # depend on them, so that state update is not modeled here.

    print("KERNEL_OK")
</pallas_src>

<mosaic_0001>
module attributes {stable_mosaic.version = 11 : i64} {
  func.func @_fused_kernel(%arg0: memref<8x128xf32, #tpu.memory_space<vmem>>, %arg1: memref<128x128xf32, #tpu.memory_space<vmem>>, %arg2: memref<1x128xf32, #tpu.memory_space<vmem>>, %arg3: memref<1x128xf32, #tpu.memory_space<vmem>>, %arg4: memref<1x128xf32, #tpu.memory_space<vmem>>, %arg5: memref<8x128xf32, #tpu.memory_space<vmem>>) attributes {dimension_semantics = [], scalar_prefetch = 0 : i64, scratch_operands = 0 : i64, tpu.core_type = #tpu.core_type<tc>} {
    %c0 = arith.constant 0 : index
    %c0_0 = arith.constant 0 : index
    %0 = vector.load %arg0[%c0, %c0_0] : memref<8x128xf32, #tpu.memory_space<vmem>>, vector<8x128xf32>
    %c0_1 = arith.constant 0 : index
    %c0_2 = arith.constant 0 : index
    %1 = vector.load %arg1[%c0_1, %c0_2] : memref<128x128xf32, #tpu.memory_space<vmem>>, vector<128x128xf32>
    %cst = arith.constant dense<0.000000e+00> : vector<8x128xf32>
    %2 = tpu.matmul %0, %1, %cst {dimension_numbers = #tpu.dot_dimension_numbers<[1], [0], [0], [1], [0, 0, 1, 1], [], []>} : vector<8x128xf32>, vector<128x128xf32>, vector<8x128xf32> -> vector<8x128xf32>
    %c0_3 = arith.constant 0 : index
    %c0_4 = arith.constant 0 : index
    %3 = vector.load %arg2[%c0_3, %c0_4] : memref<1x128xf32, #tpu.memory_space<vmem>>, vector<1x128xf32>
    %4 = vector.broadcast %3 : vector<1x128xf32> to vector<8x128xf32>
    %5 = arith.addf %2, %4 : vector<8x128xf32>
    %cst_5 = arith.constant dense<0.000000e+00> : vector<128xf32>
    %6 = vector.multi_reduction <add>, %5, %cst_5 [0] : vector<8x128xf32> to vector<128xf32>
    %7 = vector.shape_cast %6 : vector<128xf32> to vector<1x128xf32>
    %cst_6 = arith.constant 1.250000e-01 : f32
    %8 = vector.broadcast %cst_6 : f32 to vector<1x128xf32>
    %9 = arith.mulf %7, %8 : vector<1x128xf32>
    %10 = vector.broadcast %9 : vector<1x128xf32> to vector<8x128xf32>
    %11 = arith.subf %5, %10 : vector<8x128xf32>
    %12 = arith.mulf %11, %11 : vector<8x128xf32>
    %cst_7 = arith.constant dense<0.000000e+00> : vector<128xf32>
    %13 = vector.multi_reduction <add>, %12, %cst_7 [0] : vector<8x128xf32> to vector<128xf32>
    %14 = vector.shape_cast %13 : vector<128xf32> to vector<1x128xf32>
    %cst_8 = arith.constant 1.250000e-01 : f32
    %15 = vector.broadcast %cst_8 : f32 to vector<1x128xf32>
    %16 = arith.mulf %14, %15 : vector<1x128xf32>
    %cst_9 = arith.constant 9.99999974E-6 : f32
    %17 = vector.broadcast %cst_9 : f32 to vector<1x128xf32>
    %18 = arith.addf %16, %17 : vector<1x128xf32>
    %19 = math.rsqrt %18 : vector<1x128xf32>
    %c0_10 = arith.constant 0 : index
    %c0_11 = arith.constant 0 : index
    %20 = vector.load %arg3[%c0_10, %c0_11] : memref<1x128xf32, #tpu.memory_space<vmem>>, vector<1x128xf32>
    %21 = arith.mulf %19, %20 : vector<1x128xf32>
    %22 = vector.broadcast %21 : vector<1x128xf32> to vector<8x128xf32>
    %23 = arith.mulf %11, %22 : vector<8x128xf32>
    %c0_12 = arith.constant 0 : index
    %c0_13 = arith.constant 0 : index
    %24 = vector.load %arg4[%c0_12, %c0_13] : memref<1x128xf32, #tpu.memory_space<vmem>>, vector<1x128xf32>
    %25 = vector.broadcast %24 : vector<1x128xf32> to vector<8x128xf32>
    %26 = arith.addf %23, %25 : vector<8x128xf32>
    %cst_14 = arith.constant 0.000000e+00 : f32
    %27 = vector.broadcast %cst_14 : f32 to vector<8x128xf32>
    %28 = arith.maximumf %26, %27 : vector<8x128xf32>
    %c0_15 = arith.constant 0 : index
    %c0_16 = arith.constant 0 : index
    %29 = vector.load %arg5[%c0_15, %c0_16] : memref<8x128xf32, #tpu.memory_space<vmem>>, vector<8x128xf32>
    tpu.vector_store %arg5[%c0_15, %c0_16], %28 {strides = array<i32>} : memref<8x128xf32, #tpu.memory_space<vmem>>, vector<8x128xf32>,
    return
  }
}

</mosaic_0001>

<llo_original>
// kernel: tpu_custom_call.1
$region0: #{tpu_custom_call.1}
  #allocation0 [shape = 'u32[]', space=smem, size = 0x4, offset = 0x4, fixed_abs, tag = 'smem constant byte address 0x4 - core index']
  #allocation1 [shape = 'u32[72,128]{1,0:T(1,128)}', space=vmem, size = 0x9000, scoped, tag = 'internal scratch']
  %s0 = inlined_call_operand.hbm [shape: f32[8,128], index: 0, kind: input, shape index: {}]
  %s1 = inlined_call_operand.hbm [shape: f32[128,128], index: 1, kind: input, shape index: {}]
  %s2 = inlined_call_operand.vmem [shape: f32[1,128], index: 2, kind: input, shape index: {}]
  %s3 = inlined_call_operand.vmem [shape: f32[1,128], index: 3, kind: input, shape index: {}]
  %s4 = inlined_call_operand.vmem [shape: f32[1,128], index: 4, kind: input, shape index: {}]
  %s5 = inlined_call_operand.hbm [shape: f32[8,128], index: 5, kind: output, shape index: {}]
  %s6 = sld [smem:[#allocation0]]
  $region38: #{tpu_custom_call.1} parent=0
    _
  %s8 = ssub.s32 1, %s6
  %s9 = scalar_select 0, %s8, %s6
  $region1: #{tpu_custom_call.1} parent=0
    #allocation2 [shape = 'u8[4096]{0}', space=vmem, size = 0x1000, scoped, tag = 'input window, operand 0, single buffered']
    #allocation3 [shape = 's32[1]{0}', space=sflag, size = 0x4, scoped, tag = 'scoped memory for tpu_custom_call.1']
    #allocation4 [shape = 's32[1]{0}', space=sflag, size = 0x4, scoped, tag = 'scoped memory for tpu_custom_call.1']
    #allocation5 [shape = 'u8[65536]{0}', space=vmem, size = 0x10000, scoped, tag = 'input window, operand 1, single buffered']
    #allocation6 [shape = 's32[1]{0}', space=sflag, size = 0x4, scoped, tag = 'scoped memory for tpu_custom_call.1']
    #allocation7 [shape = 'u8[4096]{0}', space=vmem, size = 0x1000, scoped, tag = 'output window, operand 0, single buffered']
    %10 = vsyncpa [#allocation3], 0
    %11 = vsyncpa [#allocation6], 0
    %12 = vsyncpa [#allocation4], 0
    // Predicated region
    $region2: #{tpu_custom_call.1} parent=1 // pred_check
      _
    $region3: #{tpu_custom_call.1} parent=1 // pred_check_branch
      %14 = sbr.rel (0) target = $region5
    $region4: #{tpu_custom_call.1} parent=1 // pred_region
      %16 = vsyncadd [#allocation3], 0
      %s18 = sshll.u32 %s0, 4
      %s19 = int_to_ptr.hbm [resolvable:$true] %s18
      %s20 = sshll.u32 [#allocation2], 4
      %s21 = int_to_ptr.vmem [resolvable:$true] %s20
      %23 = dma.hbm_to_vmem [thread:$0]  %s19, 128, %s21, [#allocation3]
    $region5: #{tpu_custom_call.1} parent=1 // pred_fallthru
      _
    // Predicated region
    $region6: #{tpu_custom_call.1} parent=1 // pred_check
      _
    $region7: #{tpu_custom_call.1} parent=1 // pred_check_branch
      %25 = sbr.rel (0) target = $region9
    $region8: #{tpu_custom_call.1} parent=1 // pred_region
      %27 = vsyncadd [#allocation6], 0
      %s28 = sshll.u32 %s1, 4
      %s29 = int_to_ptr.hbm [resolvable:$true] %s28
      %s30 = sshll.u32 [#allocation5], 4
      %s31 = int_to_ptr.vmem [resolvable:$true] %s30
      %36 = dma.hbm_to_vmem [thread:$0]  %s29, 2048, %s31, [#allocation6], 128, 128, 8
    $region9: #{tpu_custom_call.1} parent=1 // pred_fallthru
      _
    // Predicated region
    $region10: #{tpu_custom_call.1} parent=1 // pred_check
      _
    $region11: #{tpu_custom_call.1} parent=1 // pred_check_branch
      %38 = sbr.rel (0) target = $region13
    $region12: #{tpu_custom_call.1} parent=1 // pred_region
      _
    $region13: #{tpu_custom_call.1} parent=1 // pred_fallthru
      _
    // Predicated region
    $region14: #{tpu_custom_call.1} parent=1 // pred_check
      _
    $region15: #{tpu_custom_call.1} parent=1 // pred_check_branch
      %40 = sbr.rel (0) target = $region17
    $region16: #{tpu_custom_call.1} parent=1 // pred_region
      _
    $region17: #{tpu_custom_call.1} parent=1 // pred_fallthru
      _
    // Predicated region
    $region18: #{tpu_custom_call.1} parent=1 // pred_check
      _
    $region19: #{tpu_custom_call.1} parent=1 // pred_check_branch
      %42 = sbr.rel (0) target = $region21
    $region20: #{tpu_custom_call.1} parent=1 // pred_region
      _
    $region21: #{tpu_custom_call.1} parent=1 // pred_fallthru
      _
    // Predicated region
    $region22: #{tpu_custom_call.1} parent=1 // pred_check
      _
    $region23: #{tpu_custom_call.1} parent=1 // pred_check_branch
      %44 = sbr.rel (0) target = $region25
    $region24: #{tpu_custom_call.1} parent=1 // pred_region
      %46 = dma.done [#allocation3], 128
    $region25: #{tpu_custom_call.1} parent=1 // pred_fallthru
      _
    // Predicated region
    $region26: #{tpu_custom_call.1} parent=1 // pred_check
      _
    $region27: #{tpu_custom_call.1} parent=1 // pred_check_branch
      %48 = sbr.rel (0) target = $region29
    $region28: #{tpu_custom_call.1} parent=1 // pred_region
      %50 = dma.done [#allocation6], 2048
    $region29: #{tpu_custom_call.1} parent=1 // pred_fallthru
      _
    %v51 = vld [vmem:[#allocation2] sm:$0xff]
    %v52 = vld [vmem:[#allocation5] sm:$0xff]
    %v53 = vld [vmem:[#allocation5 + $0x8] sm:$0xff]
    %v54 = vld [vmem:[#allocation5 + $0x10] sm:$0xff]
    %v55 = vld [vmem:[#allocation5 + $0x18] sm:$0xff]
    %v56 = vld [vmem:[#allocation5 + $0x20] sm:$0xff]
    %v57 = vld [vmem:[#allocation5 + $0x28] sm:$0xff]
    %v58 = vld [vmem:[#allocation5 + $0x30] sm:$0xff]
    %v59 = vld [vmem:[#allocation5 + $0x38] sm:$0xff]
    %v60 = vld [vmem:[#allocation5 + $0x40] sm:$0xff]
    %v61 = vld [vmem:[#allocation5 + $0x48] sm:$0xff]
    %v62 = vld [vmem:[#allocation5 + $0x50] sm:$0xff]
    %v63 = vld [vmem:[#allocation5 + $0x58] sm:$0xff]
    %v64 = vld [vmem:[#allocation5 + $0x60] sm:$0xff]
    %v65 = vld [vmem:[#allocation5 + $0x68] sm:$0xff]
    %v66 = vld [vmem:[#allocation5 + $0x70] sm:$0xff]
    %v67 = vld [vmem:[#allocation5 + $0x78] sm:$0xff]
    %v68 = vld [vmem:[%s2] sm:$0x1]
    %v70 = vperm.slane %v68, 0
    %72 = vmatpush.msra.mxu0 %v67
    %73 = vmatpush.msra.mxu0 %v66
    %74 = vmatpush.msra.mxu0 %v65
    %75 = vmatpush.msra.mxu0 %v64
    %76 = vmatpush.msra.mxu0 %v63
    %77 = vmatpush.msra.mxu0 %v62
    %78 = vmatpush.msra.mxu0 %v61
    %79 = vmatpush.msra.mxu0 %v60
    %80 = vmatpush.msra.mxu0 %v59
    %81 = vmatpush.msra.mxu0 %v58
    %82 = vmatpush.msra.mxu0 %v57
    %83 = vmatpush.msra.mxu0 %v56
    %84 = vmatpush.msra.mxu0 %v55
    %85 = vmatpush.msra.mxu0 %v54
    %86 = vmatpush.msra.mxu0 %v53
    %87 = vmatpush.msra.mxu0 %v52
    %88 = vmatmul.f32.gmra.mxu0 %v51
    %v89 = vpop.f32.mrf.mxu0
    %v90 = vadd.f32 %v70, %v89
    %91 = vdwg.mxu0
    %v92 = vrot.slane %v90, 4
    %v93 = vadd.f32 %v90, %v92
    %v94 = vrot.slane %v93, 2
    %v95 = vadd.f32 %v93, %v94
    %v96 = vrot.slane %v95, 1
    %v97 = vadd.f32 %v95, %v96
    %v98 = vmul.f32 %v97, 0.125
    %v99 = vsub.f32 %v90, %v98
    %v100 = vmul.f32 %v99, %v99
    %v101 = vrot.slane %v100, 4
    %v102 = vadd.f32 %v100, %v101
    %v103 = vrot.slane %v102, 2
    %v104 = vadd.f32 %v102, %v103
    %v105 = vrot.slane %v104, 1
    %v106 = vadd.f32 %v104, %v105
    %v107 = vmul.f32 %v106, 0.125
    %v108 = vadd.f32 %v107, 1e-05
    %v109 = vrsqrt.pop %v108
    %v110 = vmul.f32 %v109, %v108
    %v111 = vmul.f32 %v110, %v109
    %v112 = vmul.f32 0.5, %v111
    %v113 = vsub.f32 1.5, %v112
    %v114 = vmul.f32 %v109, %v113
    %vm115 = vweird.f32 %v108
    %vm116 = vweird.f32 %v109
    %vm117 = vmor %vm115, %vm116
    %v118 = vsel %vm117, %v109, %v114
    %v119 = vld [vmem:[%s3] sm:$0x1]
    %v120 = vmul.f32 %v118, %v119
    %v121 = vperm.slane %v120, 0
    %v122 = vmul.f32 %v99, %v121
    %v123 = vld [vmem:[%s4] sm:$0x1]
    %v125 = vperm.slane %v123, 0
    %v127 = vadd.f32 %v122, %v125
    %v128 = vmax.f32 %v127, 0.0
    %129 = vst [vmem:[#allocation7] sm:$0xff] %v128
    // Predicated region
    $region30: #{tpu_custom_call.1} parent=1 // pred_check
      _
    $region31: #{tpu_custom_call.1} parent=1 // pred_check_branch
      %131 = sbr.rel (0) target = $region33
    $region32: #{tpu_custom_call.1} parent=1 // pred_region
      %133 = vsyncadd [#allocation4], 0
      %s135 = sshll.u32 [#allocation7], 4
      %s136 = int_to_ptr.vmem [resolvable:$true] %s135
      %s137 = sshll.u32 %s5, 4
      %s138 = int_to_ptr.hbm [resolvable:$true] %s137
      %140 = dma.vmem_to_hbm [thread:$0]  %s136, 128, %s138, [#allocation4]
    $region33: #{tpu_custom_call.1} parent=1 // pred_fallthru
      _
    // Predicated region
    $region34: #{tpu_custom_call.1} parent=1 // pred_check
      _
    $region35: #{tpu_custom_call.1} parent=1 // pred_check_branch
      %142 = sbr.rel (0) target = $region37
    $region36: #{tpu_custom_call.1} parent=1 // pred_region
      %144 = dma.done [#allocation4], 128
    $region37: #{tpu_custom_call.1} parent=1 // pred_fallthru
      _
    %145 = vsyncpa [#allocation3], 1
    %146 = vsyncpa [#allocation6], 1
    %147 = vsyncpa [#allocation4], 1

</llo_original>
